<compile_context>
chip_gen: v5e
topology: v5e:2x2
jax: 0.10.0
libtpu: 0.0.40
codegen_flags: <defaults>
</compile_context>

<pallas_src>
import functools

import jax
import jax.numpy as jnp
from jax.experimental import pallas as pl
from jax.experimental.pallas import tpu as pltpu


def _round_up(x, m):
    return (x + m - 1) // m * m


def _pad_to(a, shape):
    pads = [(0, t - s) for s, t in zip(a.shape, shape)]
    if any(p[1] for p in pads):
        return jnp.pad(a, pads)
    return a


def _device_kind():
    try:
        return jax.devices()[0].device_kind.lower()
    except Exception:
        return ""


def _vmem_capacity_bytes():
    try:
        return int(pltpu.get_tpu_info().vmem_capacity_bytes)
    except Exception:
        return 64 << 20  # conservative (v7x-sized) fallback


def _default_epilogue_dtype():
    kind = _device_kind()
    # v6e / v7x have packed bf16 VALU -> bf16 epilogue doubles add/max throughput.
    # v5e and older have no bf16 VPU -> keep the epilogue in f32 there.
    if ("v6" in kind) or ("v7" in kind) or ("7x" in kind):
        return jnp.bfloat16
    return jnp.float32


# ---------------------------------------------------------------------------
# Kernel: fused Linear -> ReLU -> Linear -> ReLU -> Linear on one batch tile.
# ---------------------------------------------------------------------------
def _mlp_kernel(x_ref, w1_ref, b1_ref, w2_ref, b2_ref, w3_ref, b3_ref, o_ref,
                *, epilogue_dtype):
    cdt = w1_ref.dtype  # MXU compute dtype (bf16)
    zero = jnp.zeros((), epilogue_dtype)

    # Layer 1: cast x in-kernel, bf16 MXU matmul with f32 accumulation.
    x = x_ref[...].astype(cdt)
    h = jnp.dot(x, w1_ref[...], preferred_element_type=jnp.float32)
    h = jnp.maximum(h.astype(epilogue_dtype) + b1_ref[...].astype(epilogue_dtype), zero)

    # Layer 2.
    h = jnp.dot(h.astype(cdt), w2_ref[...], preferred_element_type=jnp.float32)
    h = jnp.maximum(h.astype(epilogue_dtype) + b2_ref[...].astype(epilogue_dtype), zero)

    # Layer 3 (no activation); final bias add in f32.
    out = jnp.dot(h.astype(cdt), w3_ref[...], preferred_element_type=jnp.float32)
    o_ref[...] = (out + b3_ref[...]).astype(o_ref.dtype)


# ---------------------------------------------------------------------------
# One-time parameter preparation (hoisted out of the per-call forward path).
# ---------------------------------------------------------------------------
def prepare_params(params, *, compute_dtype=jnp.bfloat16):
    """Pad feature dims to lane multiples (128) and cast weights to the MXU dtype.

    Call once and reuse the result for every forward; the padding is exact:
    zero-padded w columns / hidden units stay zero through ReLU, padded output
    columns are sliced off after the kernel.
    """
    w1, b1, w2, b2, w3, b3 = (params["w1"], params["b1"], params["w2"],
                              params["b2"], params["w3"], params["b3"])
    input_dim, hidden_dim = w1.shape
    output_dim = w3.shape[1]
    hid_p = _round_up(hidden_dim, 128)
    out_p = _round_up(output_dim, 128)

    prepped = {
        # x stays feature-unpadded (full-dim block), so w1 keeps its true input dim.
        "w1": _pad_to(w1, (input_dim, hid_p)).astype(compute_dtype),
        "w2": _pad_to(w2, (hid_p, hid_p)).astype(compute_dtype),
        "w3": _pad_to(w3, (hid_p, out_p)).astype(compute_dtype),
        "b1": _pad_to(b1.reshape(1, -1), (1, hid_p)).astype(jnp.float32),
        "b2": _pad_to(b2.reshape(1, -1), (1, hid_p)).astype(jnp.float32),
        "b3": _pad_to(b3.reshape(1, -1), (1, out_p)).astype(jnp.float32),
    }
    meta = dict(input_dim=input_dim, hidden_dim=hidden_dim, output_dim=output_dim,
                hid_p=hid_p, out_p=out_p, compute_dtype=compute_dtype)
    return prepped, meta


def _choose_batch_tiling(M, input_dim, hid_p, out_p, tile_m):
    m8 = _round_up(M, 8)
    num_tiles = max(1, pl.cdiv(m8, tile_m))
    # Give v7x's two TensorCores something to share once the matmul work clearly
    # amortizes the ~0.35us per-grid-step overhead.
    total_flops = 2 * m8 * (input_dim * hid_p + hid_p * hid_p + hid_p * out_p)
    if num_tiles == 1 and m8 >= 16 and total_flops > (1 << 30):
        num_tiles = 2
    tm = _round_up(pl.cdiv(m8, num_tiles), 8)  # balanced tiles: <8 wasted rows each
    m_pad = num_tiles * tm
    return tm, m_pad, num_tiles


# ---------------------------------------------------------------------------
# Forward pass.
# ---------------------------------------------------------------------------
def mlp_hoi_o_h_net_pallas(x, prepped, meta, *, tile_m=256,
                           out_dtype=jnp.float32, epilogue_dtype=None):
    """x: (batch, input_dim) float32.  prepped/meta from prepare_params()."""
    assert tile_m % 8 == 0
    if epilogue_dtype is None:
        epilogue_dtype = _default_epilogue_dtype()

    M, input_dim = x.shape
    assert input_dim == meta["input_dim"]
    hid_p, out_p = meta["hid_p"], meta["out_p"]
    output_dim = meta["output_dim"]
    cdt = meta["compute_dtype"]

    tm, m_pad, num_tiles = _choose_batch_tiling(M, input_dim, hid_p, out_p, tile_m)
    # x stays f32 and feature-unpadded; pad the batch dim only when needed.
    x_in = _pad_to(x, (m_pad, input_dim))

    # ---- VMEM budget: resident weights (single-buffered) + double-buffered x/out
    #      tiles + f32 intermediates + headroom, capped below physical VMEM. ----
    wbytes = jnp.dtype(cdt).itemsize
    obytes = jnp.dtype(out_dtype).itemsize
    weight_bytes = (input_dim * hid_p + hid_p * hid_p + hid_p * out_p) * wbytes
    bias_bytes = (2 * hid_p + out_p) * 4
    act_io_bytes = 2 * (tm * input_dim * x.dtype.itemsize + tm * out_p * obytes)
    interm_bytes = 2 * tm * hid_p * 4  # ~2 live f32 intermediates
    vmem_needed = weight_bytes + bias_bytes + act_io_bytes + interm_bytes + (4 << 20)
    vmem_cap = int(0.85 * _vmem_capacity_bytes())
    vmem_limit = int(min(max(vmem_needed, 16 << 20), vmem_cap))

    flops = 2 * m_pad * (input_dim * hid_p + hid_p * hid_p + hid_p * out_p)
    bytes_accessed = (m_pad * input_dim * x.dtype.itemsize + weight_bytes
                      + bias_bytes + m_pad * out_p * obytes)
    cost = pl.CostEstimate(flops=flops, transcendentals=0,
                           bytes_accessed=bytes_accessed)

    kernel = functools.partial(_mlp_kernel, epilogue_dtype=epilogue_dtype)

    def _call(single_buffer_weights):
        resident = {}
        if single_buffer_weights:
            # Constant index_maps -> one resident copy, no second pipeline buffer.
            resident["pipeline_mode"] = pl.Buffered(1)
        in_specs = [
            pl.BlockSpec((tm, input_dim), lambda i: (i, 0)),                 # x (f32)
            pl.BlockSpec((input_dim, hid_p), lambda i: (0, 0), **resident),  # w1
            pl.BlockSpec((1, hid_p), lambda i: (0, 0), **resident),          # b1
            pl.BlockSpec((hid_p, hid_p), lambda i: (0, 0), **resident),      # w2
            pl.BlockSpec((1, hid_p), lambda i: (0, 0), **resident),          # b2
            pl.BlockSpec((hid_p, out_p), lambda i: (0, 0), **resident),      # w3
            pl.BlockSpec((1, out_p), lambda i: (0, 0), **resident),          # b3
        ]
        return pl.pallas_call(
            kernel,
            out_shape=jax.ShapeDtypeStruct((m_pad, out_p), out_dtype),
            grid_spec=pl.GridSpec(
                grid=(num_tiles,),
                in_specs=in_specs,
                out_specs=pl.BlockSpec((tm, out_p), lambda i: (i, 0)),
            ),
            compiler_params=pltpu.CompilerParams(
                dimension_semantics=("parallel",),
                vmem_limit_bytes=vmem_limit,
            ),
            cost_estimate=cost,
        )(x_in, prepped["w1"], prepped["b1"], prepped["w2"], prepped["b2"],
          prepped["w3"], prepped["b3"])

    try:
        out_padded = _call(single_buffer_weights=True)
    except Exception:
        # pipeline_mode=pl.Buffered(1) unsupported here -> default double-buffering.
        out_padded = _call(single_buffer_weights=False)

    # Strip batch / output-dim padding (skip entirely if nothing was padded).
    if m_pad == M and out_p == output_dim:
        return out_padded
    return out_padded[:M, :output_dim]


# ---------------------------------------------------------------------------
# Reference + synthetic init + test.
# ---------------------------------------------------------------------------
def init_params(key, input_dim, hidden_dim, output_dim):
    """Deterministic synthetic init (mimics nn.Linear's uniform fan-in init)."""
    ks = jax.random.split(key, 6)

    def linear_init(kw, kb, fan_in, fan_out):
        bound = 1.0 / jnp.sqrt(fan_in)
        # stored as (in, out) = PyTorch weight transposed
        w = jax.random.uniform(kw, (fan_in, fan_out), jnp.float32, -bound, bound)
        b = jax.random.uniform(kb, (1, fan_out), jnp.float32, -bound, bound)
        return w, b

    w1, b1 = linear_init(ks[0], ks[1], input_dim, hidden_dim)
    w2, b2 = linear_init(ks[2], ks[3], hidden_dim, hidden_dim)
    w3, b3 = linear_init(ks[4], ks[5], hidden_dim, output_dim)
    return {"w1": w1, "b1": b1, "w2": w2, "b2": b2, "w3": w3, "b3": b3}


def reference_forward(x, p):
    h = jnp.maximum(x @ p["w1"] + p["b1"], 0.0)
    h = jnp.maximum(h @ p["w2"] + p["b2"], 0.0)
    return h @ p["w3"] + p["b3"]


if __name__ == "__main__":
    # Small shapes consistent with the module: batch=16, input=32, hidden=32, out=16.
    batch, input_dim, hidden_dim, output_dim = 16, 32, 32, 16

    key = jax.random.PRNGKey(0)
    kx, kp = jax.random.split(key)
    x = jax.random.normal(kx, (batch, input_dim), jnp.float32)
    params = init_params(kp, input_dim, hidden_dim, output_dim)

    # One-time parameter prep (pad + bf16 cast) -- hoisted out of the forward path.
    prepped, meta = prepare_params(params)

    out = mlp_hoi_o_h_net_pallas(x, prepped, meta)
    out = jax.block_until_ready(out)

    ref = reference_forward(x, params)
    assert out.shape == (batch, output_dim)
    # bf16 MXU inputs with f32 accumulation -> bf16-level tolerance vs f32 reference.
    assert jnp.allclose(out, ref, atol=4e-2, rtol=4e-2), "mismatch vs pure-JAX reference"

    print("KERNEL_OK")
</pallas_src>

<mosaic_0001>
module attributes {stable_mosaic.version = 11 : i64} {
  func.func @_mlp_kernel(%arg0: i32, %arg1: memref<16x32xf32, #tpu.memory_space<vmem>>, %arg2: memref<32x128xbf16, #tpu.memory_space<vmem>>, %arg3: memref<1x128xf32, #tpu.memory_space<vmem>>, %arg4: memref<128x128xbf16, #tpu.memory_space<vmem>>, %arg5: memref<1x128xf32, #tpu.memory_space<vmem>>, %arg6: memref<128x128xbf16, #tpu.memory_space<vmem>>, %arg7: memref<1x128xf32, #tpu.memory_space<vmem>>, %arg8: memref<16x128xf32, #tpu.memory_space<vmem>>) attributes {dimension_semantics = [#tpu.dimension_semantics<parallel>], iteration_bounds = array<i64: 1>, scalar_prefetch = 0 : i64, scratch_operands = 0 : i64, tpu.core_type = #tpu.core_type<tc>, window_params = [{transform_indices = @transform_0, window_bounds = array<i64: 16, 32>}, {pipeline_mode = #tpu.pipeline_mode<synchronous>, transform_indices = @transform_1, window_bounds = array<i64: 32, 128>}, {pipeline_mode = #tpu.pipeline_mode<synchronous>, transform_indices = @transform_2, window_bounds = array<i64: 1, 128>}, {pipeline_mode = #tpu.pipeline_mode<synchronous>, transform_indices = @transform_3, window_bounds = array<i64: 128, 128>}, {pipeline_mode = #tpu.pipeline_mode<synchronous>, transform_indices = @transform_4, window_bounds = array<i64: 1, 128>}, {pipeline_mode = #tpu.pipeline_mode<synchronous>, transform_indices = @transform_5, window_bounds = array<i64: 128, 128>}, {pipeline_mode = #tpu.pipeline_mode<synchronous>, transform_indices = @transform_6, window_bounds = array<i64: 1, 128>}, {transform_indices = @transform_7, window_bounds = array<i64: 16, 128>}]} {
    %c0 = arith.constant 0 : index
    %c0_0 = arith.constant 0 : index
    %0 = vector.load %arg1[%c0, %c0_0] : memref<16x32xf32, #tpu.memory_space<vmem>>, vector<16x32xf32>
    %1 = arith.truncf %0 : vector<16x32xf32> to vector<16x32xbf16>
    %c0_1 = arith.constant 0 : index
    %c0_2 = arith.constant 0 : index
    %2 = vector.load %arg2[%c0_1, %c0_2] : memref<32x128xbf16, #tpu.memory_space<vmem>>, vector<32x128xbf16>
    %cst = arith.constant dense<0.000000e+00> : vector<16x128xf32>
    %3 = tpu.matmul %1, %2, %cst {dimension_numbers = #tpu.dot_dimension_numbers<[1], [0], [0], [1], [0, 0, 1, 1], [], []>} : vector<16x32xbf16>, vector<32x128xbf16>, vector<16x128xf32> -> vector<16x128xf32>
    %c0_3 = arith.constant 0 : index
    %c0_4 = arith.constant 0 : index
    %4 = vector.load %arg3[%c0_3, %c0_4] : memref<1x128xf32, #tpu.memory_space<vmem>>, vector<1x128xf32>
    %5 = vector.broadcast %4 : vector<1x128xf32> to vector<16x128xf32>
    %6 = arith.addf %3, %5 : vector<16x128xf32>
    %cst_5 = arith.constant 0.000000e+00 : f32
    %7 = vector.broadcast %cst_5 : f32 to vector<16x128xf32>
    %8 = arith.maximumf %6, %7 : vector<16x128xf32>
    %9 = arith.truncf %8 : vector<16x128xf32> to vector<16x128xbf16>
    %c0_6 = arith.constant 0 : index
    %c0_7 = arith.constant 0 : index
    %10 = vector.load %arg4[%c0_6, %c0_7] : memref<128x128xbf16, #tpu.memory_space<vmem>>, vector<128x128xbf16>
    %cst_8 = arith.constant dense<0.000000e+00> : vector<16x128xf32>
    %11 = tpu.matmul %9, %10, %cst_8 {dimension_numbers = #tpu.dot_dimension_numbers<[1], [0], [0], [1], [0, 0, 1, 1], [], []>} : vector<16x128xbf16>, vector<128x128xbf16>, vector<16x128xf32> -> vector<16x128xf32>
    %c0_9 = arith.constant 0 : index
    %c0_10 = arith.constant 0 : index
    %12 = vector.load %arg5[%c0_9, %c0_10] : memref<1x128xf32, #tpu.memory_space<vmem>>, vector<1x128xf32>
    %13 = vector.broadcast %12 : vector<1x128xf32> to vector<16x128xf32>
    %14 = arith.addf %11, %13 : vector<16x128xf32>
    %cst_11 = arith.constant 0.000000e+00 : f32
    %15 = vector.broadcast %cst_11 : f32 to vector<16x128xf32>
    %16 = arith.maximumf %14, %15 : vector<16x128xf32>
    %17 = arith.truncf %16 : vector<16x128xf32> to vector<16x128xbf16>
    %c0_12 = arith.constant 0 : index
    %c0_13 = arith.constant 0 : index
    %18 = vector.load %arg6[%c0_12, %c0_13] : memref<128x128xbf16, #tpu.memory_space<vmem>>, vector<128x128xbf16>
    %cst_14 = arith.constant dense<0.000000e+00> : vector<16x128xf32>
    %19 = tpu.matmul %17, %18, %cst_14 {dimension_numbers = #tpu.dot_dimension_numbers<[1], [0], [0], [1], [0, 0, 1, 1], [], []>} : vector<16x128xbf16>, vector<128x128xbf16>, vector<16x128xf32> -> vector<16x128xf32>
    %c0_15 = arith.constant 0 : index
    %c0_16 = arith.constant 0 : index
    %20 = vector.load %arg7[%c0_15, %c0_16] : memref<1x128xf32, #tpu.memory_space<vmem>>, vector<1x128xf32>
    %21 = vector.broadcast %20 : vector<1x128xf32> to vector<16x128xf32>
    %22 = arith.addf %19, %21 : vector<16x128xf32>
    %c0_17 = arith.constant 0 : index
    %c0_18 = arith.constant 0 : index
    %23 = vector.load %arg8[%c0_17, %c0_18] : memref<16x128xf32, #tpu.memory_space<vmem>>, vector<16x128xf32>
    tpu.vector_store %arg8[%c0_17, %c0_18], %22 {strides = array<i32>} : memref<16x128xf32, #tpu.memory_space<vmem>>, vector<16x128xf32>,
    return
  }
  func.func @transform_0(%arg0: i32) -> (i32, i32) {
    %c0_i32 = arith.constant 0 : i32
    %c0_i32_0 = arith.constant 0 : i32
    return %arg0, %c0_i32 : i32, i32
  }
  func.func @transform_1(%arg0: i32) -> (i32, i32) {
    %c0_i32 = arith.constant 0 : i32
    %c0_i32_0 = arith.constant 0 : i32
    %c0_i32_1 = arith.constant 0 : i32
    return %c0_i32, %c0_i32_0 : i32, i32
  }
  func.func @transform_2(%arg0: i32) -> (i32, i32) {
    %c0_i32 = arith.constant 0 : i32
    %c0_i32_0 = arith.constant 0 : i32
    %c0_i32_1 = arith.constant 0 : i32
    return %c0_i32, %c0_i32_0 : i32, i32
  }
  func.func @transform_3(%arg0: i32) -> (i32, i32) {
    %c0_i32 = arith.constant 0 : i32
    %c0_i32_0 = arith.constant 0 : i32
    %c0_i32_1 = arith.constant 0 : i32
    return %c0_i32, %c0_i32_0 : i32, i32
  }
  func.func @transform_4(%arg0: i32) -> (i32, i32) {
    %c0_i32 = arith.constant 0 : i32
    %c0_i32_0 = arith.constant 0 : i32
    %c0_i32_1 = arith.constant 0 : i32
    return %c0_i32, %c0_i32_0 : i32, i32
  }
  func.func @transform_5(%arg0: i32) -> (i32, i32) {
    %c0_i32 = arith.constant 0 : i32
    %c0_i32_0 = arith.constant 0 : i32
    %c0_i32_1 = arith.constant 0 : i32
    return %c0_i32, %c0_i32_0 : i32, i32
  }
  func.func @transform_6(%arg0: i32) -> (i32, i32) {
    %c0_i32 = arith.constant 0 : i32
    %c0_i32_0 = arith.constant 0 : i32
    %c0_i32_1 = arith.constant 0 : i32
    return %c0_i32, %c0_i32_0 : i32, i32
  }
  func.func @transform_7(%arg0: i32) -> (i32, i32) {
    %c0_i32 = arith.constant 0 : i32
    %c0_i32_0 = arith.constant 0 : i32
    return %arg0, %c0_i32 : i32, i32
  }
}

module attributes {stable_mosaic.version = 11 : i64} {
  func.func @_mlp_kernel(%arg0: i32, %arg1: memref<16x32xf32, #tpu.memory_space<vmem>>, %arg2: memref<32x128xbf16, #tpu.memory_space<vmem>>, %arg3: memref<1x128xf32, #tpu.memory_space<vmem>>, %arg4: memref<128x128xbf16, #tpu.memory_space<vmem>>, %arg5: memref<1x128xf32, #tpu.memory_space<vmem>>, %arg6: memref<128x128xbf16, #tpu.memory_space<vmem>>, %arg7: memref<1x128xf32, #tpu.memory_space<vmem>>, %arg8: memref<16x128xf32, #tpu.memory_space<vmem>>) attributes {dimension_semantics = [#tpu.dimension_semantics<parallel>], iteration_bounds = array<i64: 1>, scalar_prefetch = 0 : i64, scratch_operands = 0 : i64, tpu.core_type = #tpu.core_type<tc>, window_params = [{transform_indices = @transform_0, window_bounds = array<i64: 16, 32>}, {pipeline_mode = #tpu.pipeline_mode<synchronous>, transform_indices = @transform_1, window_bounds = array<i64: 32, 128>}, {pipeline_mode = #tpu.pipeline_mode<synchronous>, transform_indices = @transform_2, window_bounds = array<i64: 1, 128>}, {pipeline_mode = #tpu.pipeline_mode<synchronous>, transform_indices = @transform_3, window_bounds = array<i64: 128, 128>}, {pipeline_mode = #tpu.pipeline_mode<synchronous>, transform_indices = @transform_4, window_bounds = array<i64: 1, 128>}, {pipeline_mode = #tpu.pipeline_mode<synchronous>, transform_indices = @transform_5, window_bounds = array<i64: 128, 128>}, {pipeline_mode = #tpu.pipeline_mode<synchronous>, transform_indices = @transform_6, window_bounds = array<i64: 1, 128>}, {transform_indices = @transform_7, window_bounds = array<i64: 16, 128>}]} {
    %c0 = arith.constant 0 : index
    %c0_0 = arith.constant 0 : index
    %0 = vector.load %arg1[%c0, %c0_0] : memref<16x32xf32, #tpu.memory_space<vmem>>, vector<16x32xf32>
    %1 = arith.truncf %0 : vector<16x32xf32> to vector<16x32xbf16>
    %c0_1 = arith.constant 0 : index
    %c0_2 = arith.constant 0 : index
    %2 = vector.load %arg2[%c0_1, %c0_2] : memref<32x128xbf16, #tpu.memory_space<vmem>>, vector<32x128xbf16>
    %cst = arith.constant dense<0.000000e+00> : vector<16x128xf32>
    %3 = tpu.matmul %1, %2, %cst {dimension_numbers = #tpu.dot_dimension_numbers<[1], [0], [0], [1], [0, 0, 1, 1], [], []>} : vector<16x32xbf16>, vector<32x128xbf16>, vector<16x128xf32> -> vector<16x128xf32>
    %c0_3 = arith.constant 0 : index
    %c0_4 = arith.constant 0 : index
    %4 = vector.load %arg3[%c0_3, %c0_4] : memref<1x128xf32, #tpu.memory_space<vmem>>, vector<1x128xf32>
    %5 = vector.broadcast %4 : vector<1x128xf32> to vector<16x128xf32>
    %6 = arith.addf %3, %5 : vector<16x128xf32>
    %cst_5 = arith.constant 0.000000e+00 : f32
    %7 = vector.broadcast %cst_5 : f32 to vector<16x128xf32>
    %8 = arith.maximumf %6, %7 : vector<16x128xf32>
    %9 = arith.truncf %8 : vector<16x128xf32> to vector<16x128xbf16>
    %c0_6 = arith.constant 0 : index
    %c0_7 = arith.constant 0 : index
    %10 = vector.load %arg4[%c0_6, %c0_7] : memref<128x128xbf16, #tpu.memory_space<vmem>>, vector<128x128xbf16>
    %cst_8 = arith.constant dense<0.000000e+00> : vector<16x128xf32>
    %11 = tpu.matmul %9, %10, %cst_8 {dimension_numbers = #tpu.dot_dimension_numbers<[1], [0], [0], [1], [0, 0, 1, 1], [], []>} : vector<16x128xbf16>, vector<128x128xbf16>, vector<16x128xf32> -> vector<16x128xf32>
    %c0_9 = arith.constant 0 : index
    %c0_10 = arith.constant 0 : index
    %12 = vector.load %arg5[%c0_9, %c0_10] : memref<1x128xf32, #tpu.memory_space<vmem>>, vector<1x128xf32>
    %13 = vector.broadcast %12 : vector<1x128xf32> to vector<16x128xf32>
    %14 = arith.addf %11, %13 : vector<16x128xf32>
    %cst_11 = arith.constant 0.000000e+00 : f32
    %15 = vector.broadcast %cst_11 : f32 to vector<16x128xf32>
    %16 = arith.maximumf %14, %15 : vector<16x128xf32>
    %17 = arith.truncf %16 : vector<16x128xf32> to vector<16x128xbf16>
    %c0_12 = arith.constant 0 : index
    %c0_13 = arith.constant 0 : index
    %18 = vector.load %arg6[%c0_12, %c0_13] : memref<128x128xbf16, #tpu.memory_space<vmem>>, vector<128x128xbf16>
    %cst_14 = arith.constant dense<0.000000e+00> : vector<16x128xf32>
    %19 = tpu.matmul %17, %18, %cst_14 {dimension_numbers = #tpu.dot_dimension_numbers<[1], [0], [0], [1], [0, 0, 1, 1], [], []>} : vector<16x128xbf16>, vector<128x128xbf16>, vector<16x128xf32> -> vector<16x128xf32>
    %c0_15 = arith.constant 0 : index
    %c0_16 = arith.constant 0 : index
    %20 = vector.load %arg7[%c0_15, %c0_16] : memref<1x128xf32, #tpu.memory_space<vmem>>, vector<1x128xf32>
    %21 = vector.broadcast %20 : vector<1x128xf32> to vector<16x128xf32>
    %22 = arith.addf %19, %21 : vector<16x128xf32>
    %c0_17 = arith.constant 0 : index
    %c0_18 = arith.constant 0 : index
    %23 = vector.load %arg8[%c0_17, %c0_18] : memref<16x128xf32, #tpu.memory_space<vmem>>, vector<16x128xf32>
    tpu.vector_store %arg8[%c0_17, %c0_18], %22 {strides = array<i32>} : memref<16x128xf32, #tpu.memory_space<vmem>>, vector<16x128xf32>,
    return
  }
  func.func @transform_0(%arg0: i32) -> (i32, i32) {
    %c0_i32 = arith.constant 0 : i32
    %c0_i32_0 = arith.constant 0 : i32
    return %arg0, %c0_i32 : i32, i32
  }
  func.func @transform_1(%arg0: i32) -> (i32, i32) {
    %c0_i32 = arith.constant 0 : i32
    %c0_i32_0 = arith.constant 0 : i32
    %c0_i32_1 = arith.constant 0 : i32
    return %c0_i32, %c0_i32_0 : i32, i32
  }
  func.func @transform_2(%arg0: i32) -> (i32, i32) {
    %c0_i32 = arith.constant 0 : i32
    %c0_i32_0 = arith.constant 0 : i32
    %c0_i32_1 = arith.constant 0 : i32
    return %c0_i32, %c0_i32_0 : i32, i32
  }
  func.func @transform_3(%arg0: i32) -> (i32, i32) {
    %c0_i32 = arith.constant 0 : i32
    %c0_i32_0 = arith.constant 0 : i32
    %c0_i32_1 = arith.constant 0 : i32
    return %c0_i32, %c0_i32_0 : i32, i32
  }
  func.func @transform_4(%arg0: i32) -> (i32, i32) {
    %c0_i32 = arith.constant 0 : i32
    %c0_i32_0 = arith.constant 0 : i32
    %c0_i32_1 = arith.constant 0 : i32
    return %c0_i32, %c0_i32_0 : i32, i32
  }
  func.func @transform_5(%arg0: i32) -> (i32, i32) {
    %c0_i32 = arith.constant 0 : i32
    %c0_i32_0 = arith.constant 0 : i32
    %c0_i32_1 = arith.constant 0 : i32
    return %c0_i32, %c0_i32_0 : i32, i32
  }
  func.func @transform_6(%arg0: i32) -> (i32, i32) {
    %c0_i32 = arith.constant 0 : i32
    %c0_i32_0 = arith.constant 0 : i32
    %c0_i32_1 = arith.constant 0 : i32
    return %c0_i32, %c0_i32_0 : i32, i32
  }
  func.func @transform_7(%arg0: i32) -> (i32, i32) {
    %c0_i32 = arith.constant 0 : i32
    %c0_i32_0 = arith.constant 0 : i32
    return %arg0, %c0_i32 : i32, i32
  }
}

</mosaic_0001>

<llo_original>
// kernel: tpu_custom_call.1
$region0: #{tpu_custom_call.1}
  #allocation0 [shape = 'u32[]', space=smem, size = 0x4, offset = 0x4, fixed_abs, tag = 'smem constant byte address 0x4 - core index']
  #allocation1 [shape = 'u32[72,128]{1,0:T(1,128)}', space=vmem, size = 0x9000, scoped, tag = 'internal scratch']
  %s0 = inlined_call_operand.hbm [shape: f32[16,32], index: 0, kind: input, shape index: {}]
  %s1 = inlined_call_operand.hbm [shape: bf16[32,128], index: 1, kind: input, shape index: {}]
  %s2 = inlined_call_operand.vmem [shape: f32[1,128], index: 2, kind: input, shape index: {}]
  %s3 = inlined_call_operand.hbm [shape: bf16[128,128], index: 3, kind: input, shape index: {}]
  %s4 = inlined_call_operand.vmem [shape: f32[1,128], index: 4, kind: input, shape index: {}]
  %s5 = inlined_call_operand.hbm [shape: bf16[128,128], index: 5, kind: input, shape index: {}]
  %s6 = inlined_call_operand.vmem [shape: f32[1,128], index: 6, kind: input, shape index: {}]
  %s7 = inlined_call_operand.hbm [shape: f32[16,128], index: 7, kind: output, shape index: {}]
  %s8 = sld [smem:[#allocation0]]
  $region54: #{tpu_custom_call.1} parent=0
    _
  %s10 = ssub.s32 1, %s8
  %s11 = scalar_select 0, %s10, %s8
  $region1: #{tpu_custom_call.1} parent=0
    #allocation2 [shape = 'u8[8192]{0}', space=vmem, size = 0x2000, scoped, tag = 'input window, operand 0, single buffered']
    #allocation3 [shape = 's32[1]{0}', space=sflag, size = 0x4, scoped, tag = 'scoped memory for tpu_custom_call.1']
    #allocation4 [shape = 's32[1]{0}', space=sflag, size = 0x4, scoped, tag = 'scoped memory for tpu_custom_call.1']
    #allocation5 [shape = 'u8[8192]{0}', space=vmem, size = 0x2000, scoped, tag = 'input window, operand 1, single buffered']
    #allocation6 [shape = 's32[1]{0}', space=sflag, size = 0x4, scoped, tag = 'scoped memory for tpu_custom_call.1']
    #allocation7 [shape = 'u8[32768]{0}', space=vmem, size = 0x8000, scoped, tag = 'input window, operand 3, single buffered']
    #allocation8 [shape = 'u8[32768]{0}', space=vmem, size = 0x8000, scoped, tag = 'input window, operand 5, single buffered']
    #allocation9 [shape = 's32[1]{0}', space=sflag, size = 0x4, scoped, tag = 'scoped memory for tpu_custom_call.1']
    #allocation10 [shape = 'u8[8192]{0}', space=vmem, size = 0x2000, scoped, tag = 'output window, operand 0, single buffered']
    %12 = vsyncpa [#allocation3], 0
    %13 = vsyncpa [#allocation6], 0
    %14 = vsyncpa [#allocation9], 0
    %15 = vsyncpa [#allocation4], 0
    // Predicated region
    $region2: #{tpu_custom_call.1} parent=1 // pred_check
      _
    $region3: #{tpu_custom_call.1} parent=1 // pred_check_branch
      %17 = sbr.rel (0) target = $region5
    $region4: #{tpu_custom_call.1} parent=1 // pred_region
      %19 = vsyncadd [#allocation3], 0
      %s20 = sshll.u32 %s0, 4
      %s21 = int_to_ptr.hbm [resolvable:$true] %s20
      %s22 = sshll.u32 [#allocation2], 4
      %s23 = int_to_ptr.vmem [resolvable:$true] %s22
      %28 = dma.hbm_to_vmem [thread:$0]  %s21, 256, %s23, [#allocation3], 128, 128, 8
    $region5: #{tpu_custom_call.1} parent=1 // pred_fallthru
      _
    // Predicated region
    $region6: #{tpu_custom_call.1} parent=1 // pred_check
      _
    $region7: #{tpu_custom_call.1} parent=1 // pred_check_branch
      %30 = sbr.rel (0) target = $region9
    $region8: #{tpu_custom_call.1} parent=1 // pred_region
      %32 = vsyncadd [#allocation6], 0
      %s33 = sshll.u32 %s1, 4
      %s34 = int_to_ptr.hbm [resolvable:$true] %s33
      %s35 = sshll.u32 [#allocation5], 4
      %s36 = int_to_ptr.vmem [resolvable:$true] %s35
      %41 = dma.hbm_to_vmem [thread:$0]  %s34, 256, %s36, [#allocation6], 64, 64, 4
    $region9: #{tpu_custom_call.1} parent=1 // pred_fallthru
      _
    // Predicated region
    $region10: #{tpu_custom_call.1} parent=1 // pred_check
      _
    $region11: #{tpu_custom_call.1} parent=1 // pred_check_branch
      %43 = sbr.rel (0) target = $region13
    $region12: #{tpu_custom_call.1} parent=1 // pred_region
      _
    $region13: #{tpu_custom_call.1} parent=1 // pred_fallthru
      _
    // Predicated region
    $region14: #{tpu_custom_call.1} parent=1 // pred_check
      _
    $region15: #{tpu_custom_call.1} parent=1 // pred_check_branch
      %45 = sbr.rel (0) target = $region17
    $region16: #{tpu_custom_call.1} parent=1 // pred_region
      %47 = vsyncadd [#allocation6], 0
      %s48 = sshll.u32 %s3, 4
      %s49 = int_to_ptr.hbm [resolvable:$true] %s48
      %s50 = sshll.u32 [#allocation7], 4
      %s51 = int_to_ptr.vmem [resolvable:$true] %s50
      %56 = dma.hbm_to_vmem [thread:$0]  %s49, 1024, %s51, [#allocation6], 64, 64, 4
    $region17: #{tpu_custom_call.1} parent=1 // pred_fallthru
      _
    // Predicated region
    $region18: #{tpu_custom_call.1} parent=1 // pred_check
      _
    $region19: #{tpu_custom_call.1} parent=1 // pred_check_branch
      %58 = sbr.rel (0) target = $region21
    $region20: #{tpu_custom_call.1} parent=1 // pred_region
      _
    $region21: #{tpu_custom_call.1} parent=1 // pred_fallthru
      _
    // Predicated region
    $region22: #{tpu_custom_call.1} parent=1 // pred_check
      _
    $region23: #{tpu_custom_call.1} parent=1 // pred_check_branch
      %60 = sbr.rel (0) target = $region25
    $region24: #{tpu_custom_call.1} parent=1 // pred_region
      %62 = vsyncadd [#allocation9], 0
      %s63 = sshll.u32 %s5, 4
      %s64 = int_to_ptr.hbm [resolvable:$true] %s63
      %s65 = sshll.u32 [#allocation8], 4
      %s66 = int_to_ptr.vmem [resolvable:$true] %s65
      %71 = dma.hbm_to_vmem [thread:$0]  %s64, 1024, %s66, [#allocation9], 64, 64, 4
    $region25: #{tpu_custom_call.1} parent=1 // pred_fallthru
      _
    // Predicated region
    $region26: #{tpu_custom_call.1} parent=1 // pred_check
      _
    $region27: #{tpu_custom_call.1} parent=1 // pred_check_branch
      %73 = sbr.rel (0) target = $region29
    $region28: #{tpu_custom_call.1} parent=1 // pred_region
      _
    $region29: #{tpu_custom_call.1} parent=1 // pred_fallthru
      _
    // Predicated region
    $region30: #{tpu_custom_call.1} parent=1 // pred_check
      _
    $region31: #{tpu_custom_call.1} parent=1 // pred_check_branch
      %75 = sbr.rel (0) target = $region33
    $region32: #{tpu_custom_call.1} parent=1 // pred_region
      %77 = dma.done [#allocation3], 256
    $region33: #{tpu_custom_call.1} parent=1 // pred_fallthru
      _
    // Predicated region
    $region34: #{tpu_custom_call.1} parent=1 // pred_check
      _
    $region35: #{tpu_custom_call.1} parent=1 // pred_check_branch
      %79 = sbr.rel (0) target = $region37
    $region36: #{tpu_custom_call.1} parent=1 // pred_region
      %81 = dma.done [#allocation6], 256
    $region37: #{tpu_custom_call.1} parent=1 // pred_fallthru
      _
    // Predicated region
    $region38: #{tpu_custom_call.1} parent=1 // pred_check
      _
    $region39: #{tpu_custom_call.1} parent=1 // pred_check_branch
      %83 = sbr.rel (0) target = $region41
    $region40: #{tpu_custom_call.1} parent=1 // pred_region
      %85 = dma.done [#allocation6], 1024
    $region41: #{tpu_custom_call.1} parent=1 // pred_fallthru
      _
    // Predicated region
    $region42: #{tpu_custom_call.1} parent=1 // pred_check
      _
    $region43: #{tpu_custom_call.1} parent=1 // pred_check_branch
      %87 = sbr.rel (0) target = $region45
    $region44: #{tpu_custom_call.1} parent=1 // pred_region
      %89 = dma.done [#allocation9], 1024
    $region45: #{tpu_custom_call.1} parent=1 // pred_fallthru
      _
    %v91 = vld [vmem:[#allocation2] sm:$0xff]
    %v92 = vld [vmem:[#allocation2 + $0x8] sm:$0xff]
    %v93 = vpack.c.bf16 %v92, %v91
    %v94 = vld [vmem:[#allocation5] sm:$0xf]
    %v95 = vld [vmem:[#allocation5 + $0x4] sm:$0xf]
    %v96 = vld [vmem:[#allocation5 + $0x8] sm:$0xf]
    %v97 = vld [vmem:[#allocation5 + $0xc] sm:$0xf]
    %v98 = vld [vmem:[%s2] sm:$0x1]
    %v100 = vperm.slane %v98, 0
    %v106 = vunpack.c.l.b16 %v94
    %v107 = vunpack.c.l.b16 %v95
    %v108 = vunpack.c.l.b16 %v96
    %v109 = vunpack.c.l.b16 %v97
    %v110 = vpack.c.b16 %v107, %v106
    %v111 = vpack.c.b16 %v109, %v108
    %vm114 = vcmask 261120
    %v116 = vsel %vm114, %v93, 0
    %118 = vmatpush.bf16.msra.mxu0 0
    %119 = vmatpush.bf16.msra.mxu0 0
    %120 = vmatpush.bf16.msra.mxu0 0
    %121 = vmatpush.bf16.msra.mxu0 0
    %122 = vmatpush.bf16.msra.mxu0 0
    %123 = vmatpush.bf16.msra.mxu0 0
    %124 = vmatpush.bf16.msra.mxu0 %v111
    %125 = vmatpush.bf16.msra.mxu0 %v110
    %126 = vmatmul.bf16.gmra.mxu0 %v116
    %v127 = vpop.f32.mrf.mxu0
    %v128 = vadd.f32 %v100, %v127
    %v129 = vpop.f32.mrf.mxu0
    %v130 = vadd.f32 %v100, %v129
    %131 = vdwg.mxu0
    %v132 = vmax.f32 %v128, 0.0
    %v133 = vmax.f32 %v130, 0.0
    %v134 = vpack.c.bf16 %v133, %v132
    %v135 = vld [vmem:[#allocation7] sm:$0xf]
    %v136 = vld [vmem:[#allocation7 + $0x4] sm:$0xf]
    %v137 = vld [vmem:[#allocation7 + $0x8] sm:$0xf]
    %v138 = vld [vmem:[#allocation7 + $0xc] sm:$0xf]
    %v139 = vld [vmem:[#allocation7 + $0x10] sm:$0xf]
    %v140 = vld [vmem:[#allocation7 + $0x14] sm:$0xf]
    %v141 = vld [vmem:[#allocation7 + $0x18] sm:$0xf]
    %v142 = vld [vmem:[#allocation7 + $0x1c] sm:$0xf]
    %v143 = vld [vmem:[#allocation7 + $0x20] sm:$0xf]
    %v144 = vld [vmem:[#allocation7 + $0x24] sm:$0xf]
    %v145 = vld [vmem:[#allocation7 + $0x28] sm:$0xf]
    %v146 = vld [vmem:[#allocation7 + $0x2c] sm:$0xf]
    %v147 = vld [vmem:[#allocation7 + $0x30] sm:$0xf]
    %v148 = vld [vmem:[#allocation7 + $0x34] sm:$0xf]
    %v149 = vld [vmem:[#allocation7 + $0x38] sm:$0xf]
    %v150 = vld [vmem:[#allocation7 + $0x3c] sm:$0xf]
    %v151 = vld [vmem:[%s4] sm:$0x1]
    %v153 = vperm.slane %v151, 0
    %v171 = vunpack.c.l.b16 %v135
    %v172 = vunpack.c.l.b16 %v136
    %v173 = vunpack.c.l.b16 %v137
    %v174 = vunpack.c.l.b16 %v138
    %v175 = vunpack.c.l.b16 %v139
    %v176 = vunpack.c.l.b16 %v140
    %v177 = vunpack.c.l.b16 %v141
    %v178 = vunpack.c.l.b16 %v142
    %v179 = vunpack.c.l.b16 %v143
    %v180 = vunpack.c.l.b16 %v144
    %v181 = vunpack.c.l.b16 %v145
    %v182 = vunpack.c.l.b16 %v146
    %v183 = vunpack.c.l.b16 %v147
    %v184 = vunpack.c.l.b16 %v148
    %v185 = vunpack.c.l.b16 %v149
    %v186 = vunpack.c.l.b16 %v150
    %v187 = vpack.c.b16 %v172, %v171
    %v188 = vpack.c.b16 %v174, %v173
    %v189 = vpack.c.b16 %v176, %v175
    %v190 = vpack.c.b16 %v178, %v177
    %v191 = vpack.c.b16 %v180, %v179
    %v192 = vpack.c.b16 %v182, %v181
    %v193 = vpack.c.b16 %v184, %v183
    %v194 = vpack.c.b16 %v186, %v185
    %203 = vmatpush.bf16.msra.mxu0 %v194
    %204 = vmatpush.bf16.msra.mxu0 %v193
    %205 = vmatpush.bf16.msra.mxu0 %v192
    %206 = vmatpush.bf16.msra.mxu0 %v191
    %207 = vmatpush.bf16.msra.mxu0 %v190
    %208 = vmatpush.bf16.msra.mxu0 %v189
    %209 = vmatpush.bf16.msra.mxu0 %v188
    %210 = vmatpush.bf16.msra.mxu0 %v187
    %211 = vmatmul.bf16.gmra.mxu0 %v134
    %v212 = vpop.f32.mrf.mxu0
    %v213 = vadd.f32 %v153, %v212
    %v214 = vpop.f32.mrf.mxu0
    %v215 = vadd.f32 %v153, %v214
    %216 = vdwg.mxu0
    %v217 = vmax.f32 %v213, 0.0
    %v218 = vmax.f32 %v215, 0.0
    %v219 = vpack.c.bf16 %v218, %v217
    %v220 = vld [vmem:[#allocation8] sm:$0xf]
    %v221 = vld [vmem:[#allocation8 + $0x4] sm:$0xf]
    %v222 = vld [vmem:[#allocation8 + $0x8] sm:$0xf]
    %v223 = vld [vmem:[#allocation8 + $0xc] sm:$0xf]
    %v224 = vld [vmem:[#allocation8 + $0x10] sm:$0xf]
    %v225 = vld [vmem:[#allocation8 + $0x14] sm:$0xf]
    %v226 = vld [vmem:[#allocation8 + $0x18] sm:$0xf]
    %v227 = vld [vmem:[#allocation8 + $0x1c] sm:$0xf]
    %v228 = vld [vmem:[#allocation8 + $0x20] sm:$0xf]
    %v229 = vld [vmem:[#allocation8 + $0x24] sm:$0xf]
    %v230 = vld [vmem:[#allocation8 + $0x28] sm:$0xf]
    %v231 = vld [vmem:[#allocation8 + $0x2c] sm:$0xf]
    %v232 = vld [vmem:[#allocation8 + $0x30] sm:$0xf]
    %v233 = vld [vmem:[#allocation8 + $0x34] sm:$0xf]
    %v234 = vld [vmem:[#allocation8 + $0x38] sm:$0xf]
    %v235 = vld [vmem:[#allocation8 + $0x3c] sm:$0xf]
    %v236 = vld [vmem:[%s6] sm:$0x1]
    %v238 = vperm.slane %v236, 0
    %v256 = vunpack.c.l.b16 %v220
    %v257 = vunpack.c.l.b16 %v221
    %v258 = vunpack.c.l.b16 %v222
    %v259 = vunpack.c.l.b16 %v223
    %v260 = vunpack.c.l.b16 %v224
    %v261 = vunpack.c.l.b16 %v225
    %v262 = vunpack.c.l.b16 %v226
    %v263 = vunpack.c.l.b16 %v227
    %v264 = vunpack.c.l.b16 %v228
    %v265 = vunpack.c.l.b16 %v229
    %v266 = vunpack.c.l.b16 %v230
    %v267 = vunpack.c.l.b16 %v231
    %v268 = vunpack.c.l.b16 %v232
    %v269 = vunpack.c.l.b16 %v233
    %v270 = vunpack.c.l.b16 %v234
    %v271 = vunpack.c.l.b16 %v235
    %v272 = vpack.c.b16 %v257, %v256
    %v273 = vpack.c.b16 %v259, %v258
    %v274 = vpack.c.b16 %v261, %v260
    %v275 = vpack.c.b16 %v263, %v262
    %v276 = vpack.c.b16 %v265, %v264
    %v277 = vpack.c.b16 %v267, %v266
    %v278 = vpack.c.b16 %v269, %v268
    %v279 = vpack.c.b16 %v271, %v270
    %288 = vmatpush.bf16.msra.mxu0 %v279
    %289 = vmatpush.bf16.msra.mxu0 %v278
    %290 = vmatpush.bf16.msra.mxu0 %v277
    %291 = vmatpush.bf16.msra.mxu0 %v276
    %292 = vmatpush.bf16.msra.mxu0 %v275
    %293 = vmatpush.bf16.msra.mxu0 %v274
    %294 = vmatpush.bf16.msra.mxu0 %v273
    %295 = vmatpush.bf16.msra.mxu0 %v272
    %296 = vmatmul.bf16.gmra.mxu0 %v219
    %v297 = vpop.f32.mrf.mxu0
    %v298 = vadd.f32 %v238, %v297
    %v299 = vpop.f32.mrf.mxu0
    %v300 = vadd.f32 %v238, %v299
    %301 = vdwg.mxu0
    %302 = vst [vmem:[#allocation10] sm:$0xff] %v298
    %303 = vst [vmem:[#allocation10 + $0x8] sm:$0xff] %v300
    // Predicated region
    $region46: #{tpu_custom_call.1} parent=1 // pred_check
      _
    $region47: #{tpu_custom_call.1} parent=1 // pred_check_branch
      %305 = sbr.rel (0) target = $region49
    $region48: #{tpu_custom_call.1} parent=1 // pred_region
      %307 = vsyncadd [#allocation4], 0
      %s308 = sshll.u32 [#allocation10], 4
      %s309 = int_to_ptr.vmem [resolvable:$true] %s308
      %s310 = sshll.u32 %s7, 4
      %s311 = int_to_ptr.hbm [resolvable:$true] %s310
      %316 = dma.vmem_to_hbm [thread:$0]  %s309, 256, %s311, [#allocation4], 128, 128, 8
    $region49: #{tpu_custom_call.1} parent=1 // pred_fallthru
      _
    // Predicated region
    $region50: #{tpu_custom_call.1} parent=1 // pred_check
      _
    $region51: #{tpu_custom_call.1} parent=1 // pred_check_branch
      %318 = sbr.rel (0) target = $region53
    $region52: #{tpu_custom_call.1} parent=1 // pred_region
      %320 = dma.done [#allocation4], 256
    $region53: #{tpu_custom_call.1} parent=1 // pred_fallthru
      _
    %321 = vsyncpa [#allocation3], 1
    %322 = vsyncpa [#allocation6], 1
    %323 = vsyncpa [#allocation9], 1
    %324 = vsyncpa [#allocation4], 1

// kernel: tpu_custom_call.1
$region0: #{tpu_custom_call.1}
  #allocation0 [shape = 'u32[]', space=smem, size = 0x4, offset = 0x4, fixed_abs, tag = 'smem constant byte address 0x4 - core index']
  #allocation1 [shape = 'u32[72,128]{1,0:T(1,128)}', space=vmem, size = 0x9000, scoped, tag = 'internal scratch']
  %s0 = inlined_call_operand.hbm [shape: f32[16,32], index: 0, kind: input, shape index: {}]
  %s1 = inlined_call_operand.hbm [shape: bf16[32,128], index: 1, kind: input, shape index: {}]
  %s2 = inlined_call_operand.vmem [shape: f32[1,128], index: 2, kind: input, shape index: {}]
  %s3 = inlined_call_operand.hbm [shape: bf16[128,128], index: 3, kind: input, shape index: {}]
  %s4 = inlined_call_operand.vmem [shape: f32[1,128], index: 4, kind: input, shape index: {}]
  %s5 = inlined_call_operand.hbm [shape: bf16[128,128], index: 5, kind: input, shape index: {}]
  %s6 = inlined_call_operand.vmem [shape: f32[1,128], index: 6, kind: input, shape index: {}]
  %s7 = inlined_call_operand.hbm [shape: f32[16,128], index: 7, kind: output, shape index: {}]
  %s8 = sld [smem:[#allocation0]]
  $region54: #{tpu_custom_call.1} parent=0
    _
  %s10 = ssub.s32 1, %s8
  %s11 = scalar_select 0, %s10, %s8
  $region1: #{tpu_custom_call.1} parent=0
    #allocation2 [shape = 'u8[8192]{0}', space=vmem, size = 0x2000, scoped, tag = 'input window, operand 0, single buffered']
    #allocation3 [shape = 's32[1]{0}', space=sflag, size = 0x4, scoped, tag = 'scoped memory for tpu_custom_call.1']
    #allocation4 [shape = 's32[1]{0}', space=sflag, size = 0x4, scoped, tag = 'scoped memory for tpu_custom_call.1']
    #allocation5 [shape = 'u8[8192]{0}', space=vmem, size = 0x2000, scoped, tag = 'input window, operand 1, single buffered']
    #allocation6 [shape = 's32[1]{0}', space=sflag, size = 0x4, scoped, tag = 'scoped memory for tpu_custom_call.1']
    #allocation7 [shape = 'u8[32768]{0}', space=vmem, size = 0x8000, scoped, tag = 'input window, operand 3, single buffered']
    #allocation8 [shape = 'u8[32768]{0}', space=vmem, size = 0x8000, scoped, tag = 'input window, operand 5, single buffered']
    #allocation9 [shape = 's32[1]{0}', space=sflag, size = 0x4, scoped, tag = 'scoped memory for tpu_custom_call.1']
    #allocation10 [shape = 'u8[8192]{0}', space=vmem, size = 0x2000, scoped, tag = 'output window, operand 0, single buffered']
    %12 = vsyncpa [#allocation3], 0
    %13 = vsyncpa [#allocation6], 0
    %14 = vsyncpa [#allocation9], 0
    %15 = vsyncpa [#allocation4], 0
    // Predicated region
    $region2: #{tpu_custom_call.1} parent=1 // pred_check
      _
    $region3: #{tpu_custom_call.1} parent=1 // pred_check_branch
      %17 = sbr.rel (0) target = $region5
    $region4: #{tpu_custom_call.1} parent=1 // pred_region
      %19 = vsyncadd [#allocation3], 0
      %s20 = sshll.u32 %s0, 4
      %s21 = int_to_ptr.hbm [resolvable:$true] %s20
      %s22 = sshll.u32 [#allocation2], 4
      %s23 = int_to_ptr.vmem [resolvable:$true] %s22
      %28 = dma.hbm_to_vmem [thread:$0]  %s21, 256, %s23, [#allocation3], 128, 128, 8
    $region5: #{tpu_custom_call.1} parent=1 // pred_fallthru
      _
    // Predicated region
    $region6: #{tpu_custom_call.1} parent=1 // pred_check
      _
    $region7: #{tpu_custom_call.1} parent=1 // pred_check_branch
      %30 = sbr.rel (0) target = $region9
    $region8: #{tpu_custom_call.1} parent=1 // pred_region
      %32 = vsyncadd [#allocation6], 0
      %s33 = sshll.u32 %s1, 4
      %s34 = int_to_ptr.hbm [resolvable:$true] %s33
      %s35 = sshll.u32 [#allocation5], 4
      %s36 = int_to_ptr.vmem [resolvable:$true] %s35
      %41 = dma.hbm_to_vmem [thread:$0]  %s34, 256, %s36, [#allocation6], 64, 64, 4
    $region9: #{tpu_custom_call.1} parent=1 // pred_fallthru
      _
    // Predicated region
    $region10: #{tpu_custom_call.1} parent=1 // pred_check
      _
    $region11: #{tpu_custom_call.1} parent=1 // pred_check_branch
      %43 = sbr.rel (0) target = $region13
    $region12: #{tpu_custom_call.1} parent=1 // pred_region
      _
    $region13: #{tpu_custom_call.1} parent=1 // pred_fallthru
      _
    // Predicated region
    $region14: #{tpu_custom_call.1} parent=1 // pred_check
      _
    $region15: #{tpu_custom_call.1} parent=1 // pred_check_branch
      %45 = sbr.rel (0) target = $region17
    $region16: #{tpu_custom_call.1} parent=1 // pred_region
      %47 = vsyncadd [#allocation6], 0
      %s48 = sshll.u32 %s3, 4
      %s49 = int_to_ptr.hbm [resolvable:$true] %s48
      %s50 = sshll.u32 [#allocation7], 4
      %s51 = int_to_ptr.vmem [resolvable:$true] %s50
      %56 = dma.hbm_to_vmem [thread:$0]  %s49, 1024, %s51, [#allocation6], 64, 64, 4
    $region17: #{tpu_custom_call.1} parent=1 // pred_fallthru
      _
    // Predicated region
    $region18: #{tpu_custom_call.1} parent=1 // pred_check
      _
    $region19: #{tpu_custom_call.1} parent=1 // pred_check_branch
      %58 = sbr.rel (0) target = $region21
    $region20: #{tpu_custom_call.1} parent=1 // pred_region
      _
    $region21: #{tpu_custom_call.1} parent=1 // pred_fallthru
      _
    // Predicated region
    $region22: #{tpu_custom_call.1} parent=1 // pred_check
      _
    $region23: #{tpu_custom_call.1} parent=1 // pred_check_branch
      %60 = sbr.rel (0) target = $region25
    $region24: #{tpu_custom_call.1} parent=1 // pred_region
      %62 = vsyncadd [#allocation9], 0
      %s63 = sshll.u32 %s5, 4
      %s64 = int_to_ptr.hbm [resolvable:$true] %s63
      %s65 = sshll.u32 [#allocation8], 4
      %s66 = int_to_ptr.vmem [resolvable:$true] %s65
      %71 = dma.hbm_to_vmem [thread:$0]  %s64, 1024, %s66, [#allocation9], 64, 64, 4
    $region25: #{tpu_custom_call.1} parent=1 // pred_fallthru
      _
    // Predicated region
    $region26: #{tpu_custom_call.1} parent=1 // pred_check
      _
    $region27: #{tpu_custom_call.1} parent=1 // pred_check_branch
      %73 = sbr.rel (0) target = $region29
    $region28: #{tpu_custom_call.1} parent=1 // pred_region
      _
    $region29: #{tpu_custom_call.1} parent=1 // pred_fallthru
      _
    // Predicated region
    $region30: #{tpu_custom_call.1} parent=1 // pred_check
      _
    $region31: #{tpu_custom_call.1} parent=1 // pred_check_branch
      %75 = sbr.rel (0) target = $region33
    $region32: #{tpu_custom_call.1} parent=1 // pred_region
      %77 = dma.done [#allocation3], 256
    $region33: #{tpu_custom_call.1} parent=1 // pred_fallthru
      _
    // Predicated region
    $region34: #{tpu_custom_call.1} parent=1 // pred_check
      _
    $region35: #{tpu_custom_call.1} parent=1 // pred_check_branch
      %79 = sbr.rel (0) target = $region37
    $region36: #{tpu_custom_call.1} parent=1 // pred_region
      %81 = dma.done [#allocation6], 256
    $region37: #{tpu_custom_call.1} parent=1 // pred_fallthru
      _
    // Predicated region
    $region38: #{tpu_custom_call.1} parent=1 // pred_check
      _
    $region39: #{tpu_custom_call.1} parent=1 // pred_check_branch
      %83 = sbr.rel (0) target = $region41
    $region40: #{tpu_custom_call.1} parent=1 // pred_region
      %85 = dma.done [#allocation6], 1024
    $region41: #{tpu_custom_call.1} parent=1 // pred_fallthru
      _
    // Predicated region
    $region42: #{tpu_custom_call.1} parent=1 // pred_check
      _
    $region43: #{tpu_custom_call.1} parent=1 // pred_check_branch
      %87 = sbr.rel (0) target = $region45
    $region44: #{tpu_custom_call.1} parent=1 // pred_region
      %89 = dma.done [#allocation9], 1024
    $region45: #{tpu_custom_call.1} parent=1 // pred_fallthru
      _
    %v91 = vld [vmem:[#allocation2] sm:$0xff]
    %v92 = vld [vmem:[#allocation2 + $0x8] sm:$0xff]
    %v93 = vpack.c.bf16 %v92, %v91
    %v94 = vld [vmem:[#allocation5] sm:$0xf]
    %v95 = vld [vmem:[#allocation5 + $0x4] sm:$0xf]
    %v96 = vld [vmem:[#allocation5 + $0x8] sm:$0xf]
    %v97 = vld [vmem:[#allocation5 + $0xc] sm:$0xf]
    %v98 = vld [vmem:[%s2] sm:$0x1]
    %v100 = vperm.slane %v98, 0
    %v106 = vunpack.c.l.b16 %v94
    %v107 = vunpack.c.l.b16 %v95
    %v108 = vunpack.c.l.b16 %v96
    %v109 = vunpack.c.l.b16 %v97
    %v110 = vpack.c.b16 %v107, %v106
    %v111 = vpack.c.b16 %v109, %v108
    %vm114 = vcmask 261120
    %v116 = vsel %vm114, %v93, 0
    %118 = vmatpush.bf16.msra.mxu0 0
    %119 = vmatpush.bf16.msra.mxu0 0
    %120 = vmatpush.bf16.msra.mxu0 0
    %121 = vmatpush.bf16.msra.mxu0 0
    %122 = vmatpush.bf16.msra.mxu0 0
    %123 = vmatpush.bf16.msra.mxu0 0
    %124 = vmatpush.bf16.msra.mxu0 %v111
    %125 = vmatpush.bf16.msra.mxu0 %v110
    %126 = vmatmul.bf16.gmra.mxu0 %v116
    %v127 = vpop.f32.mrf.mxu0
    %v128 = vadd.f32 %v100, %v127
    %v129 = vpop.f32.mrf.mxu0
    %v130 = vadd.f32 %v100, %v129
    %131 = vdwg.mxu0
    %v132 = vmax.f32 %v128, 0.0
    %v133 = vmax.f32 %v130, 0.0
    %v134 = vpack.c.bf16 %v133, %v132
    %v135 = vld [vmem:[#allocation7] sm:$0xf]
    %v136 = vld [vmem:[#allocation7 + $0x4] sm:$0xf]
    %v137 = vld [vmem:[#allocation7 + $0x8] sm:$0xf]
    %v138 = vld [vmem:[#allocation7 + $0xc] sm:$0xf]
    %v139 = vld [vmem:[#allocation7 + $0x10] sm:$0xf]
    %v140 = vld [vmem:[#allocation7 + $0x14] sm:$0xf]
    %v141 = vld [vmem:[#allocation7 + $0x18] sm:$0xf]
    %v142 = vld [vmem:[#allocation7 + $0x1c] sm:$0xf]
    %v143 = vld [vmem:[#allocation7 + $0x20] sm:$0xf]
    %v144 = vld [vmem:[#allocation7 + $0x24] sm:$0xf]
    %v145 = vld [vmem:[#allocation7 + $0x28] sm:$0xf]
    %v146 = vld [vmem:[#allocation7 + $0x2c] sm:$0xf]
    %v147 = vld [vmem:[#allocation7 + $0x30] sm:$0xf]
    %v148 = vld [vmem:[#allocation7 + $0x34] sm:$0xf]
    %v149 = vld [vmem:[#allocation7 + $0x38] sm:$0xf]
    %v150 = vld [vmem:[#allocation7 + $0x3c] sm:$0xf]
    %v151 = vld [vmem:[%s4] sm:$0x1]
    %v153 = vperm.slane %v151, 0
    %v171 = vunpack.c.l.b16 %v135
    %v172 = vunpack.c.l.b16 %v136
    %v173 = vunpack.c.l.b16 %v137
    %v174 = vunpack.c.l.b16 %v138
    %v175 = vunpack.c.l.b16 %v139
    %v176 = vunpack.c.l.b16 %v140
    %v177 = vunpack.c.l.b16 %v141
    %v178 = vunpack.c.l.b16 %v142
    %v179 = vunpack.c.l.b16 %v143
    %v180 = vunpack.c.l.b16 %v144
    %v181 = vunpack.c.l.b16 %v145
    %v182 = vunpack.c.l.b16 %v146
    %v183 = vunpack.c.l.b16 %v147
    %v184 = vunpack.c.l.b16 %v148
    %v185 = vunpack.c.l.b16 %v149
    %v186 = vunpack.c.l.b16 %v150
    %v187 = vpack.c.b16 %v172, %v171
    %v188 = vpack.c.b16 %v174, %v173
    %v189 = vpack.c.b16 %v176, %v175
    %v190 = vpack.c.b16 %v178, %v177
    %v191 = vpack.c.b16 %v180, %v179
    %v192 = vpack.c.b16 %v182, %v181
    %v193 = vpack.c.b16 %v184, %v183
    %v194 = vpack.c.b16 %v186, %v185
    %203 = vmatpush.bf16.msra.mxu0 %v194
    %204 = vmatpush.bf16.msra.mxu0 %v193
    %205 = vmatpush.bf16.msra.mxu0 %v192
    %206 = vmatpush.bf16.msra.mxu0 %v191
    %207 = vmatpush.bf16.msra.mxu0 %v190
    %208 = vmatpush.bf16.msra.mxu0 %v189
    %209 = vmatpush.bf16.msra.mxu0 %v188
    %210 = vmatpush.bf16.msra.mxu0 %v187
    %211 = vmatmul.bf16.gmra.mxu0 %v134
    %v212 = vpop.f32.mrf.mxu0
    %v213 = vadd.f32 %v153, %v212
    %v214 = vpop.f32.mrf.mxu0
    %v215 = vadd.f32 %v153, %v214
    %216 = vdwg.mxu0
    %v217 = vmax.f32 %v213, 0.0
    %v218 = vmax.f32 %v215, 0.0
    %v219 = vpack.c.bf16 %v218, %v217
    %v220 = vld [vmem:[#allocation8] sm:$0xf]
    %v221 = vld [vmem:[#allocation8 + $0x4] sm:$0xf]
    %v222 = vld [vmem:[#allocation8 + $0x8] sm:$0xf]
    %v223 = vld [vmem:[#allocation8 + $0xc] sm:$0xf]
    %v224 = vld [vmem:[#allocation8 + $0x10] sm:$0xf]
    %v225 = vld [vmem:[#allocation8 + $0x14] sm:$0xf]
    %v226 = vld [vmem:[#allocation8 + $0x18] sm:$0xf]
    %v227 = vld [vmem:[#allocation8 + $0x1c] sm:$0xf]
    %v228 = vld [vmem:[#allocation8 + $0x20] sm:$0xf]
    %v229 = vld [vmem:[#allocation8 + $0x24] sm:$0xf]
    %v230 = vld [vmem:[#allocation8 + $0x28] sm:$0xf]
    %v231 = vld [vmem:[#allocation8 + $0x2c] sm:$0xf]
    %v232 = vld [vmem:[#allocation8 + $0x30] sm:$0xf]
    %v233 = vld [vmem:[#allocation8 + $0x34] sm:$0xf]
    %v234 = vld [vmem:[#allocation8 + $0x38] sm:$0xf]
    %v235 = vld [vmem:[#allocation8 + $0x3c] sm:$0xf]
    %v236 = vld [vmem:[%s6] sm:$0x1]
    %v238 = vperm.slane %v236, 0
    %v256 = vunpack.c.l.b16 %v220
    %v257 = vunpack.c.l.b16 %v221
    %v258 = vunpack.c.l.b16 %v222
    %v259 = vunpack.c.l.b16 %v223
    %v260 = vunpack.c.l.b16 %v224
    %v261 = vunpack.c.l.b16 %v225
    %v262 = vunpack.c.l.b16 %v226
    %v263 = vunpack.c.l.b16 %v227
    %v264 = vunpack.c.l.b16 %v228
    %v265 = vunpack.c.l.b16 %v229
    %v266 = vunpack.c.l.b16 %v230
    %v267 = vunpack.c.l.b16 %v231
    %v268 = vunpack.c.l.b16 %v232
    %v269 = vunpack.c.l.b16 %v233
    %v270 = vunpack.c.l.b16 %v234
    %v271 = vunpack.c.l.b16 %v235
    %v272 = vpack.c.b16 %v257, %v256
    %v273 = vpack.c.b16 %v259, %v258
    %v274 = vpack.c.b16 %v261, %v260
    %v275 = vpack.c.b16 %v263, %v262
    %v276 = vpack.c.b16 %v265, %v264
    %v277 = vpack.c.b16 %v267, %v266
    %v278 = vpack.c.b16 %v269, %v268
    %v279 = vpack.c.b16 %v271, %v270
    %288 = vmatpush.bf16.msra.mxu0 %v279
    %289 = vmatpush.bf16.msra.mxu0 %v278
    %290 = vmatpush.bf16.msra.mxu0 %v277
    %291 = vmatpush.bf16.msra.mxu0 %v276
    %292 = vmatpush.bf16.msra.mxu0 %v275
    %293 = vmatpush.bf16.msra.mxu0 %v274
    %294 = vmatpush.bf16.msra.mxu0 %v273
    %295 = vmatpush.bf16.msra.mxu0 %v272
    %296 = vmatmul.bf16.gmra.mxu0 %v219
    %v297 = vpop.f32.mrf.mxu0
    %v298 = vadd.f32 %v238, %v297
    %v299 = vpop.f32.mrf.mxu0
    %v300 = vadd.f32 %v238, %v299
    %301 = vdwg.mxu0
    %302 = vst [vmem:[#allocation10] sm:$0xff] %v298
    %303 = vst [vmem:[#allocation10 + $0x8] sm:$0xff] %v300
    // Predicated region
    $region46: #{tpu_custom_call.1} parent=1 // pred_check
      _
    $region47: #{tpu_custom_call.1} parent=1 // pred_check_branch
      %305 = sbr.rel (0) target = $region49
    $region48: #{tpu_custom_call.1} parent=1 // pred_region
      %307 = vsyncadd [#allocation4], 0
      %s308 = sshll.u32 [#allocation10], 4
      %s309 = int_to_ptr.vmem [resolvable:$true] %s308
      %s310 = sshll.u32 %s7, 4
      %s311 = int_to_ptr.hbm [resolvable:$true] %s310
      %316 = dma.vmem_to_hbm [thread:$0]  %s309, 256, %s311, [#allocation4], 128, 128, 8
    $region49: #{tpu_custom_call.1} parent=1 // pred_fallthru
      _
    // Predicated region
    $region50: #{tpu_custom_call.1} parent=1 // pred_check
      _
    $region51: #{tpu_custom_call.1} parent=1 // pred_check_branch
      %318 = sbr.rel (0) target = $region53
    $region52: #{tpu_custom_call.1} parent=1 // pred_region
      %320 = dma.done [#allocation4], 256
    $region53: #{tpu_custom_call.1} parent=1 // pred_fallthru
      _
    %321 = vsyncpa [#allocation3], 1
    %322 = vsyncpa [#allocation6], 1
    %323 = vsyncpa [#allocation9], 1
    %324 = vsyncpa [#allocation4], 1

</llo_original>
